<compile_context>
chip_gen: v7x
topology: tpu7x:2x2x1
jax: 0.10.0
libtpu: 0.0.40
codegen_flags: <defaults>
</compile_context>

<pallas_src>
import jax
import jax.numpy as jnp
from jax.experimental import pallas as pl
from jax.experimental.pallas import tpu as pltpu

LANE = 128
SUBLANE = 8


def _round_up(x, m):
    return ((x + m - 1) // m) * m


# ---------------------------------------------------------------------------
# Kernel: 5 fused (bf16 matmul -> f32 bias-add -> ReLU) layers on one batch tile.
# ---------------------------------------------------------------------------
def _mlp_kernel(x_ref,
                w1_ref, b1_ref, w2_ref, b2_ref, w3_ref, b3_ref,
                w4_ref, b4_ref, w5_ref, b5_ref,
                o_ref):
    def layer(h_bf16, w_ref, b_ref):
        # bf16 x bf16 -> f32 accumulate on the MXU.
        y = jnp.dot(h_bf16, w_ref[...], preferred_element_type=jnp.float32)
        y = jnp.maximum(y + b_ref[...], 0.0)   # bias + ReLU in f32
        return y.astype(jnp.bfloat16)          # bf16 inter-layer activation

    h = layer(x_ref[...], w1_ref, b1_ref)
    h = layer(h, w2_ref, b2_ref)
    h = layer(h, w3_ref, b3_ref)
    h = layer(h, w4_ref, b4_ref)
    # Final layer: f32 epilogue, store f32 output (lane-dense, unmasked vst).
    y = jnp.dot(h, w5_ref[...], preferred_element_type=jnp.float32)
    o_ref[...] = jnp.maximum(y + b5_ref[...], 0.0).astype(o_ref.dtype)


# ---------------------------------------------------------------------------
# One-time parameter preparation (padding + bf16 cast hoisted out of forward).
# ---------------------------------------------------------------------------
def prepare_params(params):
    """params: list of 5 (W[in,out] f32, b[1,out] f32). Returns (flat, meta)."""
    flat = []
    for w, b in params:
        fi, fo = w.shape
        fi_p, fo_p = _round_up(fi, LANE), _round_up(fo, LANE)
        w_p = jnp.zeros((fi_p, fo_p), jnp.bfloat16).at[:fi, :fo].set(
            w.astype(jnp.bfloat16))
        b_p = jnp.zeros((1, fo_p), jnp.float32).at[:, :fo].set(
            b.reshape(1, -1).astype(jnp.float32))
        flat.extend([w_p, b_p])
    meta = dict(
        f_in=int(params[0][0].shape[0]),
        f_in_p=int(flat[0].shape[0]),
        out_features=int(params[-1][0].shape[1]),
        out_p=int(flat[-2].shape[1]),
    )
    return flat, meta


def _const_spec(arr):
    """Grid-invariant (weights/bias) spec; single-buffer if supported."""
    idx = lambda i: (0,) * arr.ndim
    try:
        return pl.BlockSpec(arr.shape, idx, pipeline_mode=pl.Buffered(1))
    except Exception:
        return pl.BlockSpec(arr.shape, idx)


# ---------------------------------------------------------------------------
# Forward wrapper.
# ---------------------------------------------------------------------------
def mlp_forward(x, flat_params, meta, *, batch_tile=None, unpad=True):
    """x: [B, input_shape] (any float dtype). Returns [B, output_shape] f32."""
    B, f_in = x.shape
    f_in_p, out_p = meta["f_in_p"], meta["out_p"]
    out_features = meta["out_features"]

    # ---- batch tile: whole batch when small (single grid step); for large B
    #      use big tiles (amortize ~0.35us/step) but keep >= 2 parallel grid
    #      steps so v7x's two TensorCores both get work.
    if batch_tile is None:
        b8 = _round_up(B, SUBLANE)
        if b8 <= 256:
            batch_tile = b8
        else:
            batch_tile = min(512, _round_up(pl.cdiv(b8, 2), SUBLANE))
    B_p = _round_up(B, batch_tile)
    grid = (B_p // batch_tile,)

    # ---- x in bf16 (halves input DMA bytes); pad only if needed.
    x_bf = x.astype(jnp.bfloat16)
    if (B_p, f_in_p) != (B, f_in):
        x_bf = jnp.zeros((B_p, f_in_p), jnp.bfloat16).at[:B, :f_in].set(x_bf)

    in_specs = [pl.BlockSpec((batch_tile, f_in_p), lambda i: (i, 0))]
    in_specs += [_const_spec(a) for a in flat_params]
    out_spec = pl.BlockSpec((batch_tile, out_p), lambda i: (i, 0))

    # ---- cost estimate + per-generation VMEM budget.
    weight_bytes = sum(int(a.size) * a.dtype.itemsize for a in flat_params)
    flops = 2 * B_p * sum(int(flat_params[2 * i].shape[0]) *
                          int(flat_params[2 * i].shape[1]) for i in range(5))
    bytes_accessed = B_p * f_in_p * 2 + B_p * out_p * 4 + weight_bytes
    resident = (weight_bytes                       # single-buffered weights/biases
                + 2 * batch_tile * f_in_p * 2      # double-buffered bf16 x tile
                + 2 * batch_tile * out_p * 4)      # double-buffered f32 out tile
    try:
        vmem_cap = int(pltpu.get_tpu_info().vmem_capacity_bytes)
    except Exception:
        vmem_cap = 64 * 1024 * 1024                # v7x floor
    vmem_limit = int(min(max(4 * resident, 16 << 20), (vmem_cap * 3) // 4))

    out_padded = pl.pallas_call(
        _mlp_kernel,
        out_shape=jax.ShapeDtypeStruct((B_p, out_p), jnp.float32),
        grid_spec=pltpu.PrefetchScalarGridSpec(
            num_scalar_prefetch=0,
            grid=grid,
            in_specs=in_specs,
            out_specs=out_spec,
        ),
        compiler_params=pltpu.CompilerParams(
            dimension_semantics=("parallel",),
            vmem_limit_bytes=vmem_limit),
        cost_estimate=pl.CostEstimate(
            flops=int(flops), transcendentals=0,
            bytes_accessed=int(bytes_accessed)),
    )(x_bf, *flat_params)

    if unpad:
        return out_padded[:B, :out_features]
    return out_padded


# ---------------------------------------------------------------------------
# Deterministic init mimicking nn.Linear defaults: U(-1/sqrt(fan_in), +).
# ---------------------------------------------------------------------------
def init_params(key, input_shape, hidden_units1, hidden_units2, output_shape):
    dims = [
        (input_shape, hidden_units1),
        (hidden_units1, hidden_units2),
        (hidden_units2, hidden_units2),
        (hidden_units2, hidden_units1),
        (hidden_units1, output_shape),
    ]
    params = []
    for fan_in, fan_out in dims:
        key, kw, kb = jax.random.split(key, 3)
        bound = 1.0 / jnp.sqrt(jnp.float32(fan_in))
        # stored as [in, out] == PyTorch weight [out, in] transposed
        w = jax.random.uniform(kw, (fan_in, fan_out), jnp.float32, -bound, bound)
        b = jax.random.uniform(kb, (1, fan_out), jnp.float32, -bound, bound)
        params.append((w, b))
    return params


def reference_forward(x, params):
    """Same numerics as the kernel: bf16 operands/activations, f32 accumulate."""
    h = x.astype(jnp.bfloat16)
    n = len(params)
    for i, (w, b) in enumerate(params):
        y = jnp.dot(h, w.astype(jnp.bfloat16),
                    preferred_element_type=jnp.float32)
        y = jnp.maximum(y + b.astype(jnp.float32), 0.0)
        h = y.astype(jnp.bfloat16) if i < n - 1 else y
    return h


if __name__ == "__main__":
    key = jax.random.PRNGKey(0)
    key, kx = jax.random.split(key)

    # Small shapes consistent with the module's fully-connected forward.
    B = 16
    input_shape, hidden_units1, hidden_units2, output_shape = 32, 64, 48, 8

    x = jax.random.normal(kx, (B, input_shape), jnp.float32)
    params = init_params(key, input_shape, hidden_units1, hidden_units2,
                         output_shape)

    # One-time padding / bf16 cast; baked into the jitted forward as constants.
    flat_params, meta = prepare_params(params)
    fwd = jax.jit(lambda xx: mlp_forward(xx, flat_params, meta))

    out = jax.block_until_ready(fwd(x))

    ref = reference_forward(x, params)
    assert out.shape == (B, output_shape)
    assert jnp.allclose(out, ref, atol=1e-3, rtol=1e-2), "mismatch vs reference"

    print("KERNEL_OK")
</pallas_src>

<mosaic_0001>
module attributes {stable_mosaic.version = 11 : i64} {
  func.func @_mlp_kernel(%arg0: i32, %arg1: memref<16x128xbf16, #tpu.memory_space<vmem>>, %arg2: memref<128x128xbf16, #tpu.memory_space<vmem>>, %arg3: memref<1x128xf32, #tpu.memory_space<vmem>>, %arg4: memref<128x128xbf16, #tpu.memory_space<vmem>>, %arg5: memref<1x128xf32, #tpu.memory_space<vmem>>, %arg6: memref<128x128xbf16, #tpu.memory_space<vmem>>, %arg7: memref<1x128xf32, #tpu.memory_space<vmem>>, %arg8: memref<128x128xbf16, #tpu.memory_space<vmem>>, %arg9: memref<1x128xf32, #tpu.memory_space<vmem>>, %arg10: memref<128x128xbf16, #tpu.memory_space<vmem>>, %arg11: memref<1x128xf32, #tpu.memory_space<vmem>>, %arg12: memref<16x128xf32, #tpu.memory_space<vmem>>) attributes {dimension_semantics = [#tpu.dimension_semantics<parallel>], iteration_bounds = array<i64: 1>, scalar_prefetch = 0 : i64, scratch_operands = 0 : i64, tpu.core_type = #tpu.core_type<tc>, window_params = [{transform_indices = @transform_0, window_bounds = array<i64: 16, 128>}, {pipeline_mode = #tpu.pipeline_mode<synchronous>, transform_indices = @transform_1, window_bounds = array<i64: 128, 128>}, {pipeline_mode = #tpu.pipeline_mode<synchronous>, transform_indices = @transform_2, window_bounds = array<i64: 1, 128>}, {pipeline_mode = #tpu.pipeline_mode<synchronous>, transform_indices = @transform_3, window_bounds = array<i64: 128, 128>}, {pipeline_mode = #tpu.pipeline_mode<synchronous>, transform_indices = @transform_4, window_bounds = array<i64: 1, 128>}, {pipeline_mode = #tpu.pipeline_mode<synchronous>, transform_indices = @transform_5, window_bounds = array<i64: 128, 128>}, {pipeline_mode = #tpu.pipeline_mode<synchronous>, transform_indices = @transform_6, window_bounds = array<i64: 1, 128>}, {pipeline_mode = #tpu.pipeline_mode<synchronous>, transform_indices = @transform_7, window_bounds = array<i64: 128, 128>}, {pipeline_mode = #tpu.pipeline_mode<synchronous>, transform_indices = @transform_8, window_bounds = array<i64: 1, 128>}, {pipeline_mode = #tpu.pipeline_mode<synchronous>, transform_indices = @transform_9, window_bounds = array<i64: 128, 128>}, {pipeline_mode = #tpu.pipeline_mode<synchronous>, transform_indices = @transform_10, window_bounds = array<i64: 1, 128>}, {transform_indices = @transform_11, window_bounds = array<i64: 16, 128>}]} {
    %c0 = arith.constant 0 : index
    %c0_0 = arith.constant 0 : index
    %0 = vector.load %arg1[%c0, %c0_0] : memref<16x128xbf16, #tpu.memory_space<vmem>>, vector<16x128xbf16>
    %c0_1 = arith.constant 0 : index
    %c0_2 = arith.constant 0 : index
    %1 = vector.load %arg2[%c0_1, %c0_2] : memref<128x128xbf16, #tpu.memory_space<vmem>>, vector<128x128xbf16>
    %cst = arith.constant dense<0.000000e+00> : vector<16x128xf32>
    %2 = tpu.matmul %0, %1, %cst {dimension_numbers = #tpu.dot_dimension_numbers<[1], [0], [0], [1], [0, 0, 1, 1], [], []>} : vector<16x128xbf16>, vector<128x128xbf16>, vector<16x128xf32> -> vector<16x128xf32>
    %c0_3 = arith.constant 0 : index
    %c0_4 = arith.constant 0 : index
    %3 = vector.load %arg3[%c0_3, %c0_4] : memref<1x128xf32, #tpu.memory_space<vmem>>, vector<1x128xf32>
    %4 = vector.broadcast %3 : vector<1x128xf32> to vector<16x128xf32>
    %5 = arith.addf %2, %4 : vector<16x128xf32>
    %cst_5 = arith.constant 0.000000e+00 : f32
    %6 = vector.broadcast %cst_5 : f32 to vector<16x128xf32>
    %7 = arith.maximumf %5, %6 : vector<16x128xf32>
    %8 = arith.truncf %7 : vector<16x128xf32> to vector<16x128xbf16>
    %c0_6 = arith.constant 0 : index
    %c0_7 = arith.constant 0 : index
    %9 = vector.load %arg4[%c0_6, %c0_7] : memref<128x128xbf16, #tpu.memory_space<vmem>>, vector<128x128xbf16>
    %cst_8 = arith.constant dense<0.000000e+00> : vector<16x128xf32>
    %10 = tpu.matmul %8, %9, %cst_8 {dimension_numbers = #tpu.dot_dimension_numbers<[1], [0], [0], [1], [0, 0, 1, 1], [], []>} : vector<16x128xbf16>, vector<128x128xbf16>, vector<16x128xf32> -> vector<16x128xf32>
    %c0_9 = arith.constant 0 : index
    %c0_10 = arith.constant 0 : index
    %11 = vector.load %arg5[%c0_9, %c0_10] : memref<1x128xf32, #tpu.memory_space<vmem>>, vector<1x128xf32>
    %12 = vector.broadcast %11 : vector<1x128xf32> to vector<16x128xf32>
    %13 = arith.addf %10, %12 : vector<16x128xf32>
    %cst_11 = arith.constant 0.000000e+00 : f32
    %14 = vector.broadcast %cst_11 : f32 to vector<16x128xf32>
    %15 = arith.maximumf %13, %14 : vector<16x128xf32>
    %16 = arith.truncf %15 : vector<16x128xf32> to vector<16x128xbf16>
    %c0_12 = arith.constant 0 : index
    %c0_13 = arith.constant 0 : index
    %17 = vector.load %arg6[%c0_12, %c0_13] : memref<128x128xbf16, #tpu.memory_space<vmem>>, vector<128x128xbf16>
    %cst_14 = arith.constant dense<0.000000e+00> : vector<16x128xf32>
    %18 = tpu.matmul %16, %17, %cst_14 {dimension_numbers = #tpu.dot_dimension_numbers<[1], [0], [0], [1], [0, 0, 1, 1], [], []>} : vector<16x128xbf16>, vector<128x128xbf16>, vector<16x128xf32> -> vector<16x128xf32>
    %c0_15 = arith.constant 0 : index
    %c0_16 = arith.constant 0 : index
    %19 = vector.load %arg7[%c0_15, %c0_16] : memref<1x128xf32, #tpu.memory_space<vmem>>, vector<1x128xf32>
    %20 = vector.broadcast %19 : vector<1x128xf32> to vector<16x128xf32>
    %21 = arith.addf %18, %20 : vector<16x128xf32>
    %cst_17 = arith.constant 0.000000e+00 : f32
    %22 = vector.broadcast %cst_17 : f32 to vector<16x128xf32>
    %23 = arith.maximumf %21, %22 : vector<16x128xf32>
    %24 = arith.truncf %23 : vector<16x128xf32> to vector<16x128xbf16>
    %c0_18 = arith.constant 0 : index
    %c0_19 = arith.constant 0 : index
    %25 = vector.load %arg8[%c0_18, %c0_19] : memref<128x128xbf16, #tpu.memory_space<vmem>>, vector<128x128xbf16>
    %cst_20 = arith.constant dense<0.000000e+00> : vector<16x128xf32>
    %26 = tpu.matmul %24, %25, %cst_20 {dimension_numbers = #tpu.dot_dimension_numbers<[1], [0], [0], [1], [0, 0, 1, 1], [], []>} : vector<16x128xbf16>, vector<128x128xbf16>, vector<16x128xf32> -> vector<16x128xf32>
    %c0_21 = arith.constant 0 : index
    %c0_22 = arith.constant 0 : index
    %27 = vector.load %arg9[%c0_21, %c0_22] : memref<1x128xf32, #tpu.memory_space<vmem>>, vector<1x128xf32>
    %28 = vector.broadcast %27 : vector<1x128xf32> to vector<16x128xf32>
    %29 = arith.addf %26, %28 : vector<16x128xf32>
    %cst_23 = arith.constant 0.000000e+00 : f32
    %30 = vector.broadcast %cst_23 : f32 to vector<16x128xf32>
    %31 = arith.maximumf %29, %30 : vector<16x128xf32>
    %32 = arith.truncf %31 : vector<16x128xf32> to vector<16x128xbf16>
    %c0_24 = arith.constant 0 : index
    %c0_25 = arith.constant 0 : index
    %33 = vector.load %arg10[%c0_24, %c0_25] : memref<128x128xbf16, #tpu.memory_space<vmem>>, vector<128x128xbf16>
    %cst_26 = arith.constant dense<0.000000e+00> : vector<16x128xf32>
    %34 = tpu.matmul %32, %33, %cst_26 {dimension_numbers = #tpu.dot_dimension_numbers<[1], [0], [0], [1], [0, 0, 1, 1], [], []>} : vector<16x128xbf16>, vector<128x128xbf16>, vector<16x128xf32> -> vector<16x128xf32>
    %c0_27 = arith.constant 0 : index
    %c0_28 = arith.constant 0 : index
    %35 = vector.load %arg11[%c0_27, %c0_28] : memref<1x128xf32, #tpu.memory_space<vmem>>, vector<1x128xf32>
    %36 = vector.broadcast %35 : vector<1x128xf32> to vector<16x128xf32>
    %37 = arith.addf %34, %36 : vector<16x128xf32>
    %cst_29 = arith.constant 0.000000e+00 : f32
    %38 = vector.broadcast %cst_29 : f32 to vector<16x128xf32>
    %39 = arith.maximumf %37, %38 : vector<16x128xf32>
    %c0_30 = arith.constant 0 : index
    %c0_31 = arith.constant 0 : index
    %40 = vector.load %arg12[%c0_30, %c0_31] : memref<16x128xf32, #tpu.memory_space<vmem>>, vector<16x128xf32>
    tpu.vector_store %arg12[%c0_30, %c0_31], %39 {strides = array<i32>} : memref<16x128xf32, #tpu.memory_space<vmem>>, vector<16x128xf32>,
    return
  }
  func.func @transform_0(%arg0: i32) -> (i32, i32) {
    %c0_i32 = arith.constant 0 : i32
    %c0_i32_0 = arith.constant 0 : i32
    return %arg0, %c0_i32 : i32, i32
  }
  func.func @transform_1(%arg0: i32) -> (i32, i32) {
    %c0_i32 = arith.constant 0 : i32
    %c0_i32_0 = arith.constant 0 : i32
    %c0_i32_1 = arith.constant 0 : i32
    return %c0_i32, %c0_i32_0 : i32, i32
  }
  func.func @transform_2(%arg0: i32) -> (i32, i32) {
    %c0_i32 = arith.constant 0 : i32
    %c0_i32_0 = arith.constant 0 : i32
    %c0_i32_1 = arith.constant 0 : i32
    return %c0_i32, %c0_i32_0 : i32, i32
  }
  func.func @transform_3(%arg0: i32) -> (i32, i32) {
    %c0_i32 = arith.constant 0 : i32
    %c0_i32_0 = arith.constant 0 : i32
    %c0_i32_1 = arith.constant 0 : i32
    return %c0_i32, %c0_i32_0 : i32, i32
  }
  func.func @transform_4(%arg0: i32) -> (i32, i32) {
    %c0_i32 = arith.constant 0 : i32
    %c0_i32_0 = arith.constant 0 : i32
    %c0_i32_1 = arith.constant 0 : i32
    return %c0_i32, %c0_i32_0 : i32, i32
  }
  func.func @transform_5(%arg0: i32) -> (i32, i32) {
    %c0_i32 = arith.constant 0 : i32
    %c0_i32_0 = arith.constant 0 : i32
    %c0_i32_1 = arith.constant 0 : i32
    return %c0_i32, %c0_i32_0 : i32, i32
  }
  func.func @transform_6(%arg0: i32) -> (i32, i32) {
    %c0_i32 = arith.constant 0 : i32
    %c0_i32_0 = arith.constant 0 : i32
    %c0_i32_1 = arith.constant 0 : i32
    return %c0_i32, %c0_i32_0 : i32, i32
  }
  func.func @transform_7(%arg0: i32) -> (i32, i32) {
    %c0_i32 = arith.constant 0 : i32
    %c0_i32_0 = arith.constant 0 : i32
    %c0_i32_1 = arith.constant 0 : i32
    return %c0_i32, %c0_i32_0 : i32, i32
  }
  func.func @transform_8(%arg0: i32) -> (i32, i32) {
    %c0_i32 = arith.constant 0 : i32
    %c0_i32_0 = arith.constant 0 : i32
    %c0_i32_1 = arith.constant 0 : i32
    return %c0_i32, %c0_i32_0 : i32, i32
  }
  func.func @transform_9(%arg0: i32) -> (i32, i32) {
    %c0_i32 = arith.constant 0 : i32
    %c0_i32_0 = arith.constant 0 : i32
    %c0_i32_1 = arith.constant 0 : i32
    return %c0_i32, %c0_i32_0 : i32, i32
  }
  func.func @transform_10(%arg0: i32) -> (i32, i32) {
    %c0_i32 = arith.constant 0 : i32
    %c0_i32_0 = arith.constant 0 : i32
    %c0_i32_1 = arith.constant 0 : i32
    return %c0_i32, %c0_i32_0 : i32, i32
  }
  func.func @transform_11(%arg0: i32) -> (i32, i32) {
    %c0_i32 = arith.constant 0 : i32
    %c0_i32_0 = arith.constant 0 : i32
    return %arg0, %c0_i32 : i32, i32
  }
}

</mosaic_0001>

<llo_original>
// kernel: _lambda_.1
$region0: #{_lambda_.1}
  #allocation0 [shape = 'u32[]', space=smem, size = 0x4, offset = 0x4, fixed_abs, tag = 'smem constant byte address 0x4 - core index']
  #allocation1 [shape = 'u32[144,128]{1,0:T(1,128)}', space=vmem, size = 0x12000, scoped, tag = 'internal scratch']
  %s0 = inlined_call_operand.vmem [shape: bf16[16,128], index: 0, kind: input, shape index: {}]
  %s1 = inlined_call_operand.hbm [shape: bf16[128,128], index: 1, kind: input, shape index: {}]
  %s2 = inlined_call_operand.vmem [shape: f32[1,128], index: 2, kind: input, shape index: {}]
  %s3 = inlined_call_operand.hbm [shape: bf16[128,128], index: 3, kind: input, shape index: {}]
  %s4 = inlined_call_operand.vmem [shape: f32[1,128], index: 4, kind: input, shape index: {}]
  %s5 = inlined_call_operand.hbm [shape: bf16[128,128], index: 5, kind: input, shape index: {}]
  %s6 = inlined_call_operand.vmem [shape: f32[1,128], index: 6, kind: input, shape index: {}]
  %s7 = inlined_call_operand.hbm [shape: bf16[128,128], index: 7, kind: input, shape index: {}]
  %s8 = inlined_call_operand.vmem [shape: f32[1,128], index: 8, kind: input, shape index: {}]
  %s9 = inlined_call_operand.vmem [shape: bf16[128,128], index: 9, kind: input, shape index: {}]
  %s10 = inlined_call_operand.vmem [shape: f32[1,128], index: 10, kind: input, shape index: {}]
  %s11 = inlined_call_operand.vmem [shape: f32[16,128], index: 11, kind: output, shape index: {}]
  %s12 = sld [smem:[#allocation0]]
  $region70: #{_lambda_.1} parent=0
    _
  %s14 = ssub.s32 1, %s12
  %s15 = scalar_select 0, %s14, %s12
  $region1: #{_lambda_.1} parent=0
    #allocation2 [shape = 'u8[32768]{0}', space=vmem, size = 0x8000, scoped, tag = 'input window, operand 1, single buffered']
    #allocation3 [shape = 's32[1]{0}', space=sflag, size = 0x4, scoped, tag = 'scoped memory for _lambda_.1']
    #allocation4 [shape = 'u8[32768]{0}', space=vmem, size = 0x8000, scoped, tag = 'input window, operand 3, single buffered']
    #allocation5 [shape = 's32[1]{0}', space=sflag, size = 0x4, scoped, tag = 'scoped memory for _lambda_.1']
    #allocation6 [shape = 'u8[32768]{0}', space=vmem, size = 0x8000, scoped, tag = 'input window, operand 5, single buffered']
    #allocation7 [shape = 'u8[32768]{0}', space=vmem, size = 0x8000, scoped, tag = 'input window, operand 7, single buffered']
    #allocation8 [shape = 's32[1]{0}', space=sflag, size = 0x4, scoped, tag = 'scoped memory for _lambda_.1']
    %16 = vsyncpa [#allocation3], 0
    %17 = vsyncpa [#allocation5], 0
    %18 = vsyncpa [#allocation8], 0
    // Predicated region
    $region2: #{_lambda_.1} parent=1 // pred_check
      _
    $region3: #{_lambda_.1} parent=1 // pred_check_branch
      %20 = sbr.rel (0) target = $region5
    $region4: #{_lambda_.1} parent=1 // pred_region
      _
    $region5: #{_lambda_.1} parent=1 // pred_fallthru
      _
    // Predicated region
    $region6: #{_lambda_.1} parent=1 // pred_check
      _
    $region7: #{_lambda_.1} parent=1 // pred_check_branch
      %22 = sbr.rel (0) target = $region9
    $region8: #{_lambda_.1} parent=1 // pred_region
      %s24 = ssub.s32 1024, 1024
      %25 = vsyncadd [#allocation3], %s24
      %s26 = sshll.u32 [#allocation2], 4
      %s27 = int_to_ptr.vmem [resolvable:$true] %s26
      %32 = dma.hbm_to_vmem [thread:$0]  %s1, 1024, %s27, [#allocation3], 64, 64, 4
    $region9: #{_lambda_.1} parent=1 // pred_fallthru
      _
    // Predicated region
    $region10: #{_lambda_.1} parent=1 // pred_check
      _
    $region11: #{_lambda_.1} parent=1 // pred_check_branch
      %34 = sbr.rel (0) target = $region13
    $region12: #{_lambda_.1} parent=1 // pred_region
      _
    $region13: #{_lambda_.1} parent=1 // pred_fallthru
      _
    // Predicated region
    $region14: #{_lambda_.1} parent=1 // pred_check
      _
    $region15: #{_lambda_.1} parent=1 // pred_check_branch
      %36 = sbr.rel (0) target = $region17
    $region16: #{_lambda_.1} parent=1 // pred_region
      %s38 = ssub.s32 1024, 1024
      %39 = vsyncadd [#allocation5], %s38
      %s40 = sshll.u32 [#allocation4], 4
      %s41 = int_to_ptr.vmem [resolvable:$true] %s40
      %46 = dma.hbm_to_vmem [thread:$0]  %s3, 1024, %s41, [#allocation5], 64, 64, 4
    $region17: #{_lambda_.1} parent=1 // pred_fallthru
      _
    // Predicated region
    $region18: #{_lambda_.1} parent=1 // pred_check
      _
    $region19: #{_lambda_.1} parent=1 // pred_check_branch
      %48 = sbr.rel (0) target = $region21
    $region20: #{_lambda_.1} parent=1 // pred_region
      _
    $region21: #{_lambda_.1} parent=1 // pred_fallthru
      _
    // Predicated region
    $region22: #{_lambda_.1} parent=1 // pred_check
      _
    $region23: #{_lambda_.1} parent=1 // pred_check_branch
      %50 = sbr.rel (0) target = $region25
    $region24: #{_lambda_.1} parent=1 // pred_region
      %s52 = ssub.s32 1024, 1024
      %53 = vsyncadd [#allocation5], %s52
      %s54 = sshll.u32 [#allocation6], 4
      %s55 = int_to_ptr.vmem [resolvable:$true] %s54
      %60 = dma.hbm_to_vmem [thread:$0]  %s5, 1024, %s55, [#allocation5], 64, 64, 4
    $region25: #{_lambda_.1} parent=1 // pred_fallthru
      _
    // Predicated region
    $region26: #{_lambda_.1} parent=1 // pred_check
      _
    $region27: #{_lambda_.1} parent=1 // pred_check_branch
      %62 = sbr.rel (0) target = $region29
    $region28: #{_lambda_.1} parent=1 // pred_region
      _
    $region29: #{_lambda_.1} parent=1 // pred_fallthru
      _
    // Predicated region
    $region30: #{_lambda_.1} parent=1 // pred_check
      _
    $region31: #{_lambda_.1} parent=1 // pred_check_branch
      %64 = sbr.rel (0) target = $region33
    $region32: #{_lambda_.1} parent=1 // pred_region
      %s66 = ssub.s32 1024, 1024
      %67 = vsyncadd [#allocation8], %s66
      %s68 = sshll.u32 [#allocation7], 4
      %s69 = int_to_ptr.vmem [resolvable:$true] %s68
      %74 = dma.hbm_to_vmem [thread:$0]  %s7, 1024, %s69, [#allocation8], 64, 64, 4
    $region33: #{_lambda_.1} parent=1 // pred_fallthru
      _
    // Predicated region
    $region34: #{_lambda_.1} parent=1 // pred_check
      _
    $region35: #{_lambda_.1} parent=1 // pred_check_branch
      %76 = sbr.rel (0) target = $region37
    $region36: #{_lambda_.1} parent=1 // pred_region
      _
    $region37: #{_lambda_.1} parent=1 // pred_fallthru
      _
    // Predicated region
    $region38: #{_lambda_.1} parent=1 // pred_check
      _
    $region39: #{_lambda_.1} parent=1 // pred_check_branch
      %78 = sbr.rel (0) target = $region41
    $region40: #{_lambda_.1} parent=1 // pred_region
      _
    $region41: #{_lambda_.1} parent=1 // pred_fallthru
      _
    // Predicated region
    $region42: #{_lambda_.1} parent=1 // pred_check
      _
    $region43: #{_lambda_.1} parent=1 // pred_check_branch
      %80 = sbr.rel (0) target = $region45
    $region44: #{_lambda_.1} parent=1 // pred_region
      _
    $region45: #{_lambda_.1} parent=1 // pred_fallthru
      _
    // Predicated region
    $region46: #{_lambda_.1} parent=1 // pred_check
      _
    $region47: #{_lambda_.1} parent=1 // pred_check_branch
      %82 = sbr.rel (0) target = $region49
    $region48: #{_lambda_.1} parent=1 // pred_region
      %83 = dma.done [#allocation3], 1024
    $region49: #{_lambda_.1} parent=1 // pred_fallthru
      _
    // Predicated region
    $region50: #{_lambda_.1} parent=1 // pred_check
      _
    $region51: #{_lambda_.1} parent=1 // pred_check_branch
      %85 = sbr.rel (0) target = $region53
    $region52: #{_lambda_.1} parent=1 // pred_region
      %86 = dma.done [#allocation5], 1024
    $region53: #{_lambda_.1} parent=1 // pred_fallthru
      _
    // Predicated region
    $region54: #{_lambda_.1} parent=1 // pred_check
      _
    $region55: #{_lambda_.1} parent=1 // pred_check_branch
      %88 = sbr.rel (0) target = $region57
    $region56: #{_lambda_.1} parent=1 // pred_region
      %89 = dma.done [#allocation5], 1024
    $region57: #{_lambda_.1} parent=1 // pred_fallthru
      _
    // Predicated region
    $region58: #{_lambda_.1} parent=1 // pred_check
      _
    $region59: #{_lambda_.1} parent=1 // pred_check_branch
      %91 = sbr.rel (0) target = $region61
    $region60: #{_lambda_.1} parent=1 // pred_region
      %92 = dma.done [#allocation8], 1024
    $region61: #{_lambda_.1} parent=1 // pred_fallthru
      _
    %v94 = vld [vmem:[%s0] sm:$0xf]
    %v95 = vld [vmem:[%s0 + $0x4] sm:$0xf]
    %v96 = vld [vmem:[#allocation2] sm:$0xf]
    %v97 = vld [vmem:[#allocation2 + $0x4] sm:$0xf]
    %v98 = vld [vmem:[#allocation2 + $0x8] sm:$0xf]
    %v99 = vld [vmem:[#allocation2 + $0xc] sm:$0xf]
    %v100 = vld [vmem:[#allocation2 + $0x10] sm:$0xf]
    %v101 = vld [vmem:[#allocation2 + $0x14] sm:$0xf]
    %v102 = vld [vmem:[#allocation2 + $0x18] sm:$0xf]
    %v103 = vld [vmem:[#allocation2 + $0x1c] sm:$0xf]
    %v104 = vld [vmem:[#allocation2 + $0x20] sm:$0xf]
    %v105 = vld [vmem:[#allocation2 + $0x24] sm:$0xf]
    %v106 = vld [vmem:[#allocation2 + $0x28] sm:$0xf]
    %v107 = vld [vmem:[#allocation2 + $0x2c] sm:$0xf]
    %v108 = vld [vmem:[#allocation2 + $0x30] sm:$0xf]
    %v109 = vld [vmem:[#allocation2 + $0x34] sm:$0xf]
    %v110 = vld [vmem:[#allocation2 + $0x38] sm:$0xf]
    %v111 = vld [vmem:[#allocation2 + $0x3c] sm:$0xf]
    %v112 = vld [vmem:[%s2] sm:$0x1]
    %v114 = vlaneseq
    %v115 = vshrl.u32 %v114, 7
    %v116 = vsub.s32 0, %v115
    %v117 = vrot.slane %v112, %v116
    %v121 = vunpack.c.l.b16 %v94
    %v122 = vunpack.c.l.b16 %v95
    %v123 = vpack.c.b16 %v122, %v121
    %v141 = vunpack.c.l.b16 %v96
    %v142 = vunpack.c.l.b16 %v97
    %v143 = vunpack.c.l.b16 %v98
    %v144 = vunpack.c.l.b16 %v99
    %v145 = vunpack.c.l.b16 %v100
    %v146 = vunpack.c.l.b16 %v101
    %v147 = vunpack.c.l.b16 %v102
    %v148 = vunpack.c.l.b16 %v103
    %v149 = vunpack.c.l.b16 %v104
    %v150 = vunpack.c.l.b16 %v105
    %v151 = vunpack.c.l.b16 %v106
    %v152 = vunpack.c.l.b16 %v107
    %v153 = vunpack.c.l.b16 %v108
    %v154 = vunpack.c.l.b16 %v109
    %v155 = vunpack.c.l.b16 %v110
    %v156 = vunpack.c.l.b16 %v111
    %v157 = vpack.c.b16 %v142, %v141
    %v158 = vpack.c.b16 %v144, %v143
    %v159 = vpack.c.b16 %v146, %v145
    %v160 = vpack.c.b16 %v148, %v147
    %v161 = vpack.c.b16 %v150, %v149
    %v162 = vpack.c.b16 %v152, %v151
    %v163 = vpack.c.b16 %v154, %v153
    %v164 = vpack.c.b16 %v156, %v155
    %173 = vmatprep.subr.bf16.mxu0 0
    %174 = vmatpush1.bf16.msra.mxu0 %v157
    %175 = vmatprep.subr.bf16.mxu0 0
    %176 = vmatpush1.bf16.msra.mxu0 %v158
    %177 = vmatprep.subr.bf16.mxu0 0
    %178 = vmatpush1.bf16.msra.mxu0 %v159
    %179 = vmatprep.subr.bf16.mxu0 0
    %180 = vmatpush1.bf16.msra.mxu0 %v160
    %181 = vmatprep.subr.bf16.mxu0 0
    %182 = vmatpush1.bf16.msra.mxu0 %v161
    %183 = vmatprep.subr.bf16.mxu0 0
    %184 = vmatpush1.bf16.msra.mxu0 %v162
    %185 = vmatprep.subr.bf16.mxu0 0
    %186 = vmatpush1.bf16.msra.mxu0 %v163
    %187 = vmatprep.subr.bf16.mxu0 0
    %188 = vmatpush1.bf16.msra.mxu0 %v164
    %189 = vmatprep.subr.bf16.mxu0 0
    %190 = vmatpush1.bf16.msra.mxu0 0
    %191 = vmatprep.subr.bf16.mxu0 0
    %192 = vmatpush1.bf16.msra.mxu0 0
    %193 = vmatprep.subr.bf16.mxu0 0
    %194 = vmatpush1.bf16.msra.mxu0 0
    %195 = vmatprep.subr.bf16.mxu0 0
    %196 = vmatpush1.bf16.msra.mxu0 0
    %197 = vmatprep.subr.bf16.mxu0 0
    %198 = vmatpush1.bf16.msra.mxu0 0
    %199 = vmatprep.subr.bf16.mxu0 0
    %200 = vmatpush1.bf16.msra.mxu0 0
    %201 = vmatprep.subr.bf16.mxu0 0
    %202 = vmatpush1.bf16.msra.mxu0 0
    %203 = vmatprep.subr.bf16.mxu0 0
    %204 = vmatpush1.bf16.msra.mxu0 0
    %205 = vmatprep.mubr.bf16.mxu0 0
    %206 = vmatmul.mubr.bf16.gmra.mrb[0].mxu0 %v123
    %v207 = vpop.f32.mrb[0].mxu0
    %v208 = vadd.f32 %v117, %v207
    %v209 = vpop.f32.mrb[0].mxu0
    %v210 = vpop.f32.mrb[0].mxu0
    %v211 = vadd.f32 %v117, %v210
    %v212 = vpop.f32.mrb[0].mxu0
    %213 = vdwg.mxu0
    %v214 = vmax.f32 %v208, 0.0
    %v215 = vmax.f32 %v211, 0.0
    %v216 = vpack.c.bf16 %v215, %v214
    %v217 = vld [vmem:[#allocation4] sm:$0xf]
    %v218 = vld [vmem:[#allocation4 + $0x4] sm:$0xf]
    %v219 = vld [vmem:[#allocation4 + $0x8] sm:$0xf]
    %v220 = vld [vmem:[#allocation4 + $0xc] sm:$0xf]
    %v221 = vld [vmem:[#allocation4 + $0x10] sm:$0xf]
    %v222 = vld [vmem:[#allocation4 + $0x14] sm:$0xf]
    %v223 = vld [vmem:[#allocation4 + $0x18] sm:$0xf]
    %v224 = vld [vmem:[#allocation4 + $0x1c] sm:$0xf]
    %v225 = vld [vmem:[#allocation4 + $0x20] sm:$0xf]
    %v226 = vld [vmem:[#allocation4 + $0x24] sm:$0xf]
    %v227 = vld [vmem:[#allocation4 + $0x28] sm:$0xf]
    %v228 = vld [vmem:[#allocation4 + $0x2c] sm:$0xf]
    %v229 = vld [vmem:[#allocation4 + $0x30] sm:$0xf]
    %v230 = vld [vmem:[#allocation4 + $0x34] sm:$0xf]
    %v231 = vld [vmem:[#allocation4 + $0x38] sm:$0xf]
    %v232 = vld [vmem:[#allocation4 + $0x3c] sm:$0xf]
    %v233 = vld [vmem:[%s4] sm:$0x1]
    %v235 = vlaneseq
    %v236 = vshrl.u32 %v235, 7
    %v237 = vsub.s32 0, %v236
    %v238 = vrot.slane %v233, %v237
    %v256 = vunpack.c.l.b16 %v217
    %v257 = vunpack.c.l.b16 %v218
    %v258 = vunpack.c.l.b16 %v219
    %v259 = vunpack.c.l.b16 %v220
    %v260 = vunpack.c.l.b16 %v221
    %v261 = vunpack.c.l.b16 %v222
    %v262 = vunpack.c.l.b16 %v223
    %v263 = vunpack.c.l.b16 %v224
    %v264 = vunpack.c.l.b16 %v225
    %v265 = vunpack.c.l.b16 %v226
    %v266 = vunpack.c.l.b16 %v227
    %v267 = vunpack.c.l.b16 %v228
    %v268 = vunpack.c.l.b16 %v229
    %v269 = vunpack.c.l.b16 %v230
    %v270 = vunpack.c.l.b16 %v231
    %v271 = vunpack.c.l.b16 %v232
    %v272 = vpack.c.b16 %v257, %v256
    %v273 = vpack.c.b16 %v259, %v258
    %v274 = vpack.c.b16 %v261, %v260
    %v275 = vpack.c.b16 %v263, %v262
    %v276 = vpack.c.b16 %v265, %v264
    %v277 = vpack.c.b16 %v267, %v266
    %v278 = vpack.c.b16 %v269, %v268
    %v279 = vpack.c.b16 %v271, %v270
    %288 = vmatprep.subr.bf16.mxu0 0
    %289 = vmatpush1.bf16.msra.mxu0 %v272
    %290 = vmatprep.subr.bf16.mxu0 0
    %291 = vmatpush1.bf16.msra.mxu0 %v273
    %292 = vmatprep.subr.bf16.mxu0 0
    %293 = vmatpush1.bf16.msra.mxu0 %v274
    %294 = vmatprep.subr.bf16.mxu0 0
    %295 = vmatpush1.bf16.msra.mxu0 %v275
    %296 = vmatprep.subr.bf16.mxu0 0
    %297 = vmatpush1.bf16.msra.mxu0 %v276
    %298 = vmatprep.subr.bf16.mxu0 0
    %299 = vmatpush1.bf16.msra.mxu0 %v277
    %300 = vmatprep.subr.bf16.mxu0 0
    %301 = vmatpush1.bf16.msra.mxu0 %v278
    %302 = vmatprep.subr.bf16.mxu0 0
    %303 = vmatpush1.bf16.msra.mxu0 %v279
    %304 = vmatprep.subr.bf16.mxu0 0
    %305 = vmatpush1.bf16.msra.mxu0 0
    %306 = vmatprep.subr.bf16.mxu0 0
    %307 = vmatpush1.bf16.msra.mxu0 0
    %308 = vmatprep.subr.bf16.mxu0 0
    %309 = vmatpush1.bf16.msra.mxu0 0
    %310 = vmatprep.subr.bf16.mxu0 0
    %311 = vmatpush1.bf16.msra.mxu0 0
    %312 = vmatprep.subr.bf16.mxu0 0
    %313 = vmatpush1.bf16.msra.mxu0 0
    %314 = vmatprep.subr.bf16.mxu0 0
    %315 = vmatpush1.bf16.msra.mxu0 0
    %316 = vmatprep.subr.bf16.mxu0 0
    %317 = vmatpush1.bf16.msra.mxu0 0
    %318 = vmatprep.subr.bf16.mxu0 0
    %319 = vmatpush1.bf16.msra.mxu0 0
    %320 = vmatprep.mubr.bf16.mxu0 0
    %321 = vmatmul.mubr.bf16.gmra.mrb[0].mxu0 %v216
    %v322 = vpop.f32.mrb[0].mxu0
    %v323 = vadd.f32 %v238, %v322
    %v324 = vpop.f32.mrb[0].mxu0
    %v325 = vpop.f32.mrb[0].mxu0
    %v326 = vadd.f32 %v238, %v325
    %v327 = vpop.f32.mrb[0].mxu0
    %328 = vdwg.mxu0
    %v329 = vmax.f32 %v323, 0.0
    %v330 = vmax.f32 %v326, 0.0
    %v331 = vpack.c.bf16 %v330, %v329
    %v332 = vld [vmem:[#allocation6] sm:$0xf]
    %v333 = vld [vmem:[#allocation6 + $0x4] sm:$0xf]
    %v334 = vld [vmem:[#allocation6 + $0x8] sm:$0xf]
    %v335 = vld [vmem:[#allocation6 + $0xc] sm:$0xf]
    %v336 = vld [vmem:[#allocation6 + $0x10] sm:$0xf]
    %v337 = vld [vmem:[#allocation6 + $0x14] sm:$0xf]
    %v338 = vld [vmem:[#allocation6 + $0x18] sm:$0xf]
    %v339 = vld [vmem:[#allocation6 + $0x1c] sm:$0xf]
    %v340 = vld [vmem:[#allocation6 + $0x20] sm:$0xf]
    %v341 = vld [vmem:[#allocation6 + $0x24] sm:$0xf]
    %v342 = vld [vmem:[#allocation6 + $0x28] sm:$0xf]
    %v343 = vld [vmem:[#allocation6 + $0x2c] sm:$0xf]
    %v344 = vld [vmem:[#allocation6 + $0x30] sm:$0xf]
    %v345 = vld [vmem:[#allocation6 + $0x34] sm:$0xf]
    %v346 = vld [vmem:[#allocation6 + $0x38] sm:$0xf]
    %v347 = vld [vmem:[#allocation6 + $0x3c] sm:$0xf]
    %v348 = vld [vmem:[%s6] sm:$0x1]
    %v350 = vlaneseq
    %v351 = vshrl.u32 %v350, 7
    %v352 = vsub.s32 0, %v351
    %v353 = vrot.slane %v348, %v352
    %v371 = vunpack.c.l.b16 %v332
    %v372 = vunpack.c.l.b16 %v333
    %v373 = vunpack.c.l.b16 %v334
    %v374 = vunpack.c.l.b16 %v335
    %v375 = vunpack.c.l.b16 %v336
    %v376 = vunpack.c.l.b16 %v337
    %v377 = vunpack.c.l.b16 %v338
    %v378 = vunpack.c.l.b16 %v339
    %v379 = vunpack.c.l.b16 %v340
    %v380 = vunpack.c.l.b16 %v341
    %v381 = vunpack.c.l.b16 %v342
    %v382 = vunpack.c.l.b16 %v343
    %v383 = vunpack.c.l.b16 %v344
    %v384 = vunpack.c.l.b16 %v345
    %v385 = vunpack.c.l.b16 %v346
    %v386 = vunpack.c.l.b16 %v347
    %v387 = vpack.c.b16 %v372, %v371
    %v388 = vpack.c.b16 %v374, %v373
    %v389 = vpack.c.b16 %v376, %v375
    %v390 = vpack.c.b16 %v378, %v377
    %v391 = vpack.c.b16 %v380, %v379
    %v392 = vpack.c.b16 %v382, %v381
    %v393 = vpack.c.b16 %v384, %v383
    %v394 = vpack.c.b16 %v386, %v385
    %403 = vmatprep.subr.bf16.mxu0 0
    %404 = vmatpush1.bf16.msra.mxu0 %v387
    %405 = vmatprep.subr.bf16.mxu0 0
    %406 = vmatpush1.bf16.msra.mxu0 %v388
    %407 = vmatprep.subr.bf16.mxu0 0
    %408 = vmatpush1.bf16.msra.mxu0 %v389
    %409 = vmatprep.subr.bf16.mxu0 0
    %410 = vmatpush1.bf16.msra.mxu0 %v390
    %411 = vmatprep.subr.bf16.mxu0 0
    %412 = vmatpush1.bf16.msra.mxu0 %v391
    %413 = vmatprep.subr.bf16.mxu0 0
    %414 = vmatpush1.bf16.msra.mxu0 %v392
    %415 = vmatprep.subr.bf16.mxu0 0
    %416 = vmatpush1.bf16.msra.mxu0 %v393
    %417 = vmatprep.subr.bf16.mxu0 0
    %418 = vmatpush1.bf16.msra.mxu0 %v394
    %419 = vmatprep.subr.bf16.mxu0 0
    %420 = vmatpush1.bf16.msra.mxu0 0
    %421 = vmatprep.subr.bf16.mxu0 0
    %422 = vmatpush1.bf16.msra.mxu0 0
    %423 = vmatprep.subr.bf16.mxu0 0
    %424 = vmatpush1.bf16.msra.mxu0 0
    %425 = vmatprep.subr.bf16.mxu0 0
    %426 = vmatpush1.bf16.msra.mxu0 0
    %427 = vmatprep.subr.bf16.mxu0 0
    %428 = vmatpush1.bf16.msra.mxu0 0
    %429 = vmatprep.subr.bf16.mxu0 0
    %430 = vmatpush1.bf16.msra.mxu0 0
    %431 = vmatprep.subr.bf16.mxu0 0
    %432 = vmatpush1.bf16.msra.mxu0 0
    %433 = vmatprep.subr.bf16.mxu0 0
    %434 = vmatpush1.bf16.msra.mxu0 0
    %435 = vmatprep.mubr.bf16.mxu0 0
    %436 = vmatmul.mubr.bf16.gmra.mrb[0].mxu0 %v331
    %v437 = vpop.f32.mrb[0].mxu0
    %v438 = vadd.f32 %v353, %v437
    %v439 = vpop.f32.mrb[0].mxu0
    %v440 = vpop.f32.mrb[0].mxu0
    %v441 = vadd.f32 %v353, %v440
    %v442 = vpop.f32.mrb[0].mxu0
    %443 = vdwg.mxu0
    %v444 = vmax.f32 %v438, 0.0
    %v445 = vmax.f32 %v441, 0.0
    %v446 = vpack.c.bf16 %v445, %v444
    %v447 = vld [vmem:[#allocation7] sm:$0xf]
    %v448 = vld [vmem:[#allocation7 + $0x4] sm:$0xf]
    %v449 = vld [vmem:[#allocation7 + $0x8] sm:$0xf]
    %v450 = vld [vmem:[#allocation7 + $0xc] sm:$0xf]
    %v451 = vld [vmem:[#allocation7 + $0x10] sm:$0xf]
    %v452 = vld [vmem:[#allocation7 + $0x14] sm:$0xf]
    %v453 = vld [vmem:[#allocation7 + $0x18] sm:$0xf]
    %v454 = vld [vmem:[#allocation7 + $0x1c] sm:$0xf]
    %v455 = vld [vmem:[#allocation7 + $0x20] sm:$0xf]
    %v456 = vld [vmem:[#allocation7 + $0x24] sm:$0xf]
    %v457 = vld [vmem:[#allocation7 + $0x28] sm:$0xf]
    %v458 = vld [vmem:[#allocation7 + $0x2c] sm:$0xf]
    %v459 = vld [vmem:[#allocation7 + $0x30] sm:$0xf]
    %v460 = vld [vmem:[#allocation7 + $0x34] sm:$0xf]
    %v461 = vld [vmem:[#allocation7 + $0x38] sm:$0xf]
    %v462 = vld [vmem:[#allocation7 + $0x3c] sm:$0xf]
    %v463 = vld [vmem:[%s8] sm:$0x1]
    %v465 = vlaneseq
    %v466 = vshrl.u32 %v465, 7
    %v467 = vsub.s32 0, %v466
    %v468 = vrot.slane %v463, %v467
    %v486 = vunpack.c.l.b16 %v447
    %v487 = vunpack.c.l.b16 %v448
    %v488 = vunpack.c.l.b16 %v449
    %v489 = vunpack.c.l.b16 %v450
    %v490 = vunpack.c.l.b16 %v451
    %v491 = vunpack.c.l.b16 %v452
    %v492 = vunpack.c.l.b16 %v453
    %v493 = vunpack.c.l.b16 %v454
    %v494 = vunpack.c.l.b16 %v455
    %v495 = vunpack.c.l.b16 %v456
    %v496 = vunpack.c.l.b16 %v457
    %v497 = vunpack.c.l.b16 %v458
    %v498 = vunpack.c.l.b16 %v459
    %v499 = vunpack.c.l.b16 %v460
    %v500 = vunpack.c.l.b16 %v461
    %v501 = vunpack.c.l.b16 %v462
    %v502 = vpack.c.b16 %v487, %v486
    %v503 = vpack.c.b16 %v489, %v488
    %v504 = vpack.c.b16 %v491, %v490
    %v505 = vpack.c.b16 %v493, %v492
    %v506 = vpack.c.b16 %v495, %v494
    %v507 = vpack.c.b16 %v497, %v496
    %v508 = vpack.c.b16 %v499, %v498
    %v509 = vpack.c.b16 %v501, %v500
    %518 = vmatprep.subr.bf16.mxu0 0
    %519 = vmatpush1.bf16.msra.mxu0 %v502
    %520 = vmatprep.subr.bf16.mxu0 0
    %521 = vmatpush1.bf16.msra.mxu0 %v503
    %522 = vmatprep.subr.bf16.mxu0 0
    %523 = vmatpush1.bf16.msra.mxu0 %v504
    %524 = vmatprep.subr.bf16.mxu0 0
    %525 = vmatpush1.bf16.msra.mxu0 %v505
    %526 = vmatprep.subr.bf16.mxu0 0
    %527 = vmatpush1.bf16.msra.mxu0 %v506
    %528 = vmatprep.subr.bf16.mxu0 0
    %529 = vmatpush1.bf16.msra.mxu0 %v507
    %530 = vmatprep.subr.bf16.mxu0 0
    %531 = vmatpush1.bf16.msra.mxu0 %v508
    %532 = vmatprep.subr.bf16.mxu0 0
    %533 = vmatpush1.bf16.msra.mxu0 %v509
    %534 = vmatprep.subr.bf16.mxu0 0
    %535 = vmatpush1.bf16.msra.mxu0 0
    %536 = vmatprep.subr.bf16.mxu0 0
    %537 = vmatpush1.bf16.msra.mxu0 0
    %538 = vmatprep.subr.bf16.mxu0 0
    %539 = vmatpush1.bf16.msra.mxu0 0
    %540 = vmatprep.subr.bf16.mxu0 0
    %541 = vmatpush1.bf16.msra.mxu0 0
    %542 = vmatprep.subr.bf16.mxu0 0
    %543 = vmatpush1.bf16.msra.mxu0 0
    %544 = vmatprep.subr.bf16.mxu0 0
    %545 = vmatpush1.bf16.msra.mxu0 0
    %546 = vmatprep.subr.bf16.mxu0 0
    %547 = vmatpush1.bf16.msra.mxu0 0
    %548 = vmatprep.subr.bf16.mxu0 0
    %549 = vmatpush1.bf16.msra.mxu0 0
    %550 = vmatprep.mubr.bf16.mxu0 0
    %551 = vmatmul.mubr.bf16.gmra.mrb[0].mxu0 %v446
    %v552 = vpop.f32.mrb[0].mxu0
    %v553 = vadd.f32 %v468, %v552
    %v554 = vpop.f32.mrb[0].mxu0
    %v555 = vpop.f32.mrb[0].mxu0
    %v556 = vadd.f32 %v468, %v555
    %v557 = vpop.f32.mrb[0].mxu0
    %558 = vdwg.mxu0
    %v559 = vmax.f32 %v553, 0.0
    %v560 = vmax.f32 %v556, 0.0
    %v561 = vpack.c.bf16 %v560, %v559
    %v562 = vld [vmem:[%s9] sm:$0xf]
    %v563 = vld [vmem:[%s9 + $0x4] sm:$0xf]
    %v564 = vld [vmem:[%s9 + $0x8] sm:$0xf]
    %v565 = vld [vmem:[%s9 + $0xc] sm:$0xf]
    %v566 = vld [vmem:[%s9 + $0x10] sm:$0xf]
    %v567 = vld [vmem:[%s9 + $0x14] sm:$0xf]
    %v568 = vld [vmem:[%s9 + $0x18] sm:$0xf]
    %v569 = vld [vmem:[%s9 + $0x1c] sm:$0xf]
    %v570 = vld [vmem:[%s9 + $0x20] sm:$0xf]
    %v571 = vld [vmem:[%s9 + $0x24] sm:$0xf]
    %v572 = vld [vmem:[%s9 + $0x28] sm:$0xf]
    %v573 = vld [vmem:[%s9 + $0x2c] sm:$0xf]
    %v574 = vld [vmem:[%s9 + $0x30] sm:$0xf]
    %v575 = vld [vmem:[%s9 + $0x34] sm:$0xf]
    %v576 = vld [vmem:[%s9 + $0x38] sm:$0xf]
    %v577 = vld [vmem:[%s9 + $0x3c] sm:$0xf]
    %v578 = vld [vmem:[%s10] sm:$0x1]
    %v580 = vlaneseq
    %v581 = vshrl.u32 %v580, 7
    %v582 = vsub.s32 0, %v581
    %v583 = vrot.slane %v578, %v582
    %v601 = vunpack.c.l.b16 %v562
    %v602 = vunpack.c.l.b16 %v563
    %v603 = vunpack.c.l.b16 %v564
    %v604 = vunpack.c.l.b16 %v565
    %v605 = vunpack.c.l.b16 %v566
    %v606 = vunpack.c.l.b16 %v567
    %v607 = vunpack.c.l.b16 %v568
    %v608 = vunpack.c.l.b16 %v569
    %v609 = vunpack.c.l.b16 %v570
    %v610 = vunpack.c.l.b16 %v571
    %v611 = vunpack.c.l.b16 %v572
    %v612 = vunpack.c.l.b16 %v573
    %v613 = vunpack.c.l.b16 %v574
    %v614 = vunpack.c.l.b16 %v575
    %v615 = vunpack.c.l.b16 %v576
    %v616 = vunpack.c.l.b16 %v577
    %v617 = vpack.c.b16 %v602, %v601
    %v618 = vpack.c.b16 %v604, %v603
    %v619 = vpack.c.b16 %v606, %v605
    %v620 = vpack.c.b16 %v608, %v607
    %v621 = vpack.c.b16 %v610, %v609
    %v622 = vpack.c.b16 %v612, %v611
    %v623 = vpack.c.b16 %v614, %v613
    %v624 = vpack.c.b16 %v616, %v615
    %633 = vmatprep.subr.bf16.mxu0 0
    %634 = vmatpush1.bf16.msra.mxu0 %v617
    %635 = vmatprep.subr.bf16.mxu0 0
    %636 = vmatpush1.bf16.msra.mxu0 %v618
    %637 = vmatprep.subr.bf16.mxu0 0
    %638 = vmatpush1.bf16.msra.mxu0 %v619
    %639 = vmatprep.subr.bf16.mxu0 0
    %640 = vmatpush1.bf16.msra.mxu0 %v620
    %641 = vmatprep.subr.bf16.mxu0 0
    %642 = vmatpush1.bf16.msra.mxu0 %v621
    %643 = vmatprep.subr.bf16.mxu0 0
    %644 = vmatpush1.bf16.msra.mxu0 %v622
    %645 = vmatprep.subr.bf16.mxu0 0
    %646 = vmatpush1.bf16.msra.mxu0 %v623
    %647 = vmatprep.subr.bf16.mxu0 0
    %648 = vmatpush1.bf16.msra.mxu0 %v624
    %649 = vmatprep.subr.bf16.mxu0 0
    %650 = vmatpush1.bf16.msra.mxu0 0
    %651 = vmatprep.subr.bf16.mxu0 0
    %652 = vmatpush1.bf16.msra.mxu0 0
    %653 = vmatprep.subr.bf16.mxu0 0
    %654 = vmatpush1.bf16.msra.mxu0 0
    %655 = vmatprep.subr.bf16.mxu0 0
    %656 = vmatpush1.bf16.msra.mxu0 0
    %657 = vmatprep.subr.bf16.mxu0 0
    %658 = vmatpush1.bf16.msra.mxu0 0
    %659 = vmatprep.subr.bf16.mxu0 0
    %660 = vmatpush1.bf16.msra.mxu0 0
    %661 = vmatprep.subr.bf16.mxu0 0
    %662 = vmatpush1.bf16.msra.mxu0 0
    %663 = vmatprep.subr.bf16.mxu0 0
    %664 = vmatpush1.bf16.msra.mxu0 0
    %665 = vmatprep.mubr.bf16.mxu0 0
    %666 = vmatmul.mubr.bf16.gmra.mrb[0].mxu0 %v561
    %v667 = vpop.f32.mrb[0].mxu0
    %v668 = vadd.f32 %v583, %v667
    %v669 = vpop.f32.mrb[0].mxu0
    %v670 = vpop.f32.mrb[0].mxu0
    %v671 = vadd.f32 %v583, %v670
    %v672 = vpop.f32.mrb[0].mxu0
    %673 = vdwg.mxu0
    %v674 = vmax.f32 %v668, 0.0
    %v675 = vmax.f32 %v671, 0.0
    %676 = vst [vmem:[%s11] sm:$0xff] %v674
    %677 = vst [vmem:[%s11 + $0x8] sm:$0xff] %v675
    // Predicated region
    $region62: #{_lambda_.1} parent=1 // pred_check
      _
    $region63: #{_lambda_.1} parent=1 // pred_check_branch
      %679 = sbr.rel (0) target = $region65
    $region64: #{_lambda_.1} parent=1 // pred_region
      _
    $region65: #{_lambda_.1} parent=1 // pred_fallthru
      _
    // Predicated region
    $region66: #{_lambda_.1} parent=1 // pred_check
      _
    $region67: #{_lambda_.1} parent=1 // pred_check_branch
      %681 = sbr.rel (0) target = $region69
    $region68: #{_lambda_.1} parent=1 // pred_region
      _
    $region69: #{_lambda_.1} parent=1 // pred_fallthru
      _
    %682 = vsyncpa [#allocation3], 1
    %683 = vsyncpa [#allocation5], 1
    %684 = vsyncpa [#allocation8], 1

</llo_original>
